<compile_context>
chip_gen: v5e
topology: v5e:2x2
jax: 0.10.0
libtpu: 0.0.40
codegen_flags: <defaults>
</compile_context>

<pallas_src>
import functools

import jax
import jax.numpy as jnp
from jax.experimental import pallas as pl
from jax.experimental.pallas import tpu as pltpu

LANE = 128
NEG_INF = -1e30  # bias for padded class columns (exp -> 0, excluded from the softmax sum)


def _round_up(x, m):
    return (x + m - 1) // m * m


def policy_net_kernel(x_ref, w1_ref, b1_ref, w2_ref, w3_ref, out_ref):
    # fc1 + ReLU.  x block is the native (tile_b, 42) f32; cast to bf16 for the MXU,
    # accumulate in f32.  b1's pad column 127 is 1.0 -> h1[:, 127] == 1 after ReLU,
    # which carries b2/b3 through the next two matmuls (they live in row 127 of w2/w3).
    x = x_ref[...].astype(w1_ref.dtype)
    h1 = jnp.dot(x, w1_ref[...], preferred_element_type=jnp.float32) + b1_ref[...]
    h1 = jnp.maximum(h1, 0.0).astype(w2_ref.dtype)
    # fc2 + ReLU (bias folded into w2).
    h2 = jnp.dot(h1, w2_ref[...], preferred_element_type=jnp.float32)
    h2 = jnp.maximum(h2, 0.0).astype(w3_ref.dtype)
    # fc3 + softmax over the class dim (bias folded into w3; pad classes get -1e30).
    logits = jnp.dot(h2, w3_ref[...], preferred_element_type=jnp.float32)
    m = jnp.max(logits, axis=-1, keepdims=True)
    e = jnp.exp(logits - m)
    denom = jnp.sum(e, axis=-1, keepdims=True)
    out_ref[...] = (e / denom).astype(out_ref.dtype)  # exact divide: rows sum to 1


def init_params(key, num_funcs, hidden_dim):
    """PyTorch-Linear-equivalent params, stored as (in_features, out_features)."""
    d_in = num_funcs * 5 + 2
    ks = jax.random.split(key, 6)

    def lin(kw, kb, fan_in, fan_out):
        bound = 1.0 / jnp.sqrt(fan_in)
        w = jax.random.uniform(kw, (fan_in, fan_out), jnp.float32, -bound, bound)
        b = jax.random.uniform(kb, (1, fan_out), jnp.float32, -bound, bound)
        return w, b

    w1, b1 = lin(ks[0], ks[1], d_in, hidden_dim)
    w2, b2 = lin(ks[2], ks[3], hidden_dim, hidden_dim)
    w3, b3 = lin(ks[4], ks[5], hidden_dim, num_funcs)
    return (w1, b1, w2, b2, w3, b3)


def pad_params(params, compute_dtype=jnp.bfloat16):
    """Lane-pad hidden/class dims to 128 and fold b2/b3 into w2/w3.

    Layout trick: b1's pad entry [127] is 1.0, so h1[:, 127] == 1 after ReLU.  Row 127 of
    w2 holds b2 (plus w2[127,127]=1 to keep the constant alive), and row 127 of w3 holds
    b3 for the real classes and -1e30 for the padded classes.  Zero padding elsewhere is
    exact through matmul+ReLU.  Weights go to bf16 (MXU); b1 stays f32 (post-accum add).
    """
    w1, b1, w2, b2, w3, b3 = params
    d_in, h = w1.shape
    nf = w3.shape[1]
    h_p, nf_p = _round_up(h, LANE), _round_up(nf, LANE)
    ones_col = h_p - 1  # pad column of h1/h2 that carries the constant 1.0

    w1p = jnp.zeros((d_in, h_p), compute_dtype).at[:, :h].set(w1.astype(compute_dtype))
    b1p = (jnp.zeros((1, h_p), jnp.float32)
           .at[:, :h].set(b1)
           .at[:, ones_col].set(1.0))
    w2p = (jnp.zeros((h_p, h_p), compute_dtype)
           .at[:h, :h].set(w2.astype(compute_dtype))
           .at[ones_col, :h].set(b2[0].astype(compute_dtype))
           .at[ones_col, ones_col].set(1.0))
    w3p = (jnp.zeros((h_p, nf_p), compute_dtype)
           .at[:h, :nf].set(w3.astype(compute_dtype))
           .at[ones_col, :nf].set(b3[0].astype(compute_dtype))
           .at[ones_col, nf:].set(NEG_INF))
    return (w1p, b1p, w2p, w3p)


def _select_tile_b(batch, requested):
    """Batch tile: big (>=1024 by default), multiple of 16, >=2 tiles for large batches."""
    min_tile = 16
    tile = max(min_tile, min(int(requested), 2048))
    b_full = _round_up(batch, min_tile)
    tile = min(tile, b_full)
    # Keep at least two batch tiles when the batch allows it, so the "parallel" grid axis
    # spans both TensorCores on v7x (harmless on single-TC v5e/v6e).
    if b_full >= 2 * min_tile:
        tile = min(tile, _round_up(pl.cdiv(b_full, 2), min_tile))
    return tile


@functools.partial(jax.jit, static_argnames=("num_funcs", "tile_b"))
def policy_net_forward(x, padded_params, *, num_funcs, tile_b=1024):
    """x: (B, num_funcs*5+2) f32. Returns (B, num_funcs) probabilities (f32)."""
    w1, b1, w2, w3 = padded_params
    B, d_in = x.shape
    h_p, nf_p = w2.shape[0], w3.shape[1]

    tile_b = _select_tile_b(B, tile_b)
    b_pad = _round_up(B, tile_b)

    # Rows-only pad: feature dim stays at its native width; bf16 cast happens in-kernel.
    x_p = jnp.pad(x, ((0, b_pad - B), (0, 0)))

    flops = 2 * b_pad * (d_in * h_p + h_p * h_p + h_p * nf_p)
    bytes_accessed = int(x_p.size * x_p.dtype.itemsize
                         + sum(p.size * p.dtype.itemsize for p in padded_params)
                         + b_pad * nf_p * 4)

    out = pl.pallas_call(
        policy_net_kernel,
        out_shape=jax.ShapeDtypeStruct((b_pad, nf_p), jnp.float32),
        grid=(b_pad // tile_b,),
        in_specs=[
            pl.BlockSpec((tile_b, d_in), lambda i: (i, 0)),  # x: tiled over batch, native K
            pl.BlockSpec((d_in, h_p), lambda i: (0, 0)),     # w1: resident
            pl.BlockSpec((1, h_p), lambda i: (0, 0)),        # b1 (carries the constant-1)
            pl.BlockSpec((h_p, h_p), lambda i: (0, 0)),      # w2 (b2 folded in)
            pl.BlockSpec((h_p, nf_p), lambda i: (0, 0)),     # w3 (b3 + pad -1e30 folded in)
        ],
        out_specs=pl.BlockSpec((tile_b, nf_p), lambda i: (i, 0)),
        compiler_params=pltpu.CompilerParams(
            dimension_semantics=("parallel",),   # batch tiles shard across TCs on v7x
            vmem_limit_bytes=32 * 1024 * 1024,
        ),
        cost_estimate=pl.CostEstimate(
            flops=flops, transcendentals=b_pad * nf_p, bytes_accessed=bytes_accessed),
    )(x_p, w1, b1, w2, w3)

    # Slice back to the caller-visible shape (PyTorch semantics).  A fused consumer could
    # instead take the padded (b_pad, 128) slab directly to avoid this copy.
    return out[:B, :num_funcs]


def policy_net_reference(x, params):
    w1, b1, w2, b2, w3, b3 = params
    h1 = jnp.maximum(x @ w1 + b1, 0.0)
    h2 = jnp.maximum(h1 @ w2 + b2, 0.0)
    return jax.nn.softmax(h2 @ w3 + b3, axis=1)


if __name__ == "__main__":
    num_funcs = 8
    hidden_dim = 32
    batch = 2
    d_in = num_funcs * 5 + 2  # 42

    key = jax.random.PRNGKey(0)
    k_x, k_p = jax.random.split(key)
    x = jax.random.normal(k_x, (batch, d_in), dtype=jnp.float32)
    params = init_params(k_p, num_funcs, hidden_dim)
    padded = pad_params(params)

    probs = policy_net_forward(x, padded, num_funcs=num_funcs)
    probs = jax.block_until_ready(probs)

    assert probs.shape == (batch, num_funcs)
    row_sums = jnp.sum(probs, axis=1)
    assert bool(jnp.all(jnp.abs(row_sums - 1.0) < 1e-3)), row_sums
    ref = policy_net_reference(x, params)
    assert bool(jnp.all(jnp.abs(probs - ref) < 5e-2)), float(jnp.max(jnp.abs(probs - ref)))
    print("KERNEL_OK")
</pallas_src>

<mosaic_0001>
module attributes {stable_mosaic.version = 11 : i64} {
  func.func @policy_net_kernel(%arg0: i32, %arg1: memref<16x42xf32, #tpu.memory_space<vmem>>, %arg2: memref<42x128xbf16, #tpu.memory_space<vmem>>, %arg3: memref<1x128xf32, #tpu.memory_space<vmem>>, %arg4: memref<128x128xbf16, #tpu.memory_space<vmem>>, %arg5: memref<128x128xbf16, #tpu.memory_space<vmem>>, %arg6: memref<16x128xf32, #tpu.memory_space<vmem>>) attributes {dimension_semantics = [#tpu.dimension_semantics<parallel>], iteration_bounds = array<i64: 1>, scalar_prefetch = 0 : i64, scratch_operands = 0 : i64, tpu.core_type = #tpu.core_type<tc>, window_params = [{transform_indices = @transform_0, window_bounds = array<i64: 16, 42>}, {pipeline_mode = #tpu.pipeline_mode<synchronous>, transform_indices = @transform_1, window_bounds = array<i64: 42, 128>}, {pipeline_mode = #tpu.pipeline_mode<synchronous>, transform_indices = @transform_2, window_bounds = array<i64: 1, 128>}, {pipeline_mode = #tpu.pipeline_mode<synchronous>, transform_indices = @transform_3, window_bounds = array<i64: 128, 128>}, {pipeline_mode = #tpu.pipeline_mode<synchronous>, transform_indices = @transform_4, window_bounds = array<i64: 128, 128>}, {transform_indices = @transform_5, window_bounds = array<i64: 16, 128>}]} {
    %c0 = arith.constant 0 : index
    %c0_0 = arith.constant 0 : index
    %0 = vector.load %arg1[%c0, %c0_0] : memref<16x42xf32, #tpu.memory_space<vmem>>, vector<16x42xf32>
    %1 = arith.truncf %0 : vector<16x42xf32> to vector<16x42xbf16>
    %c0_1 = arith.constant 0 : index
    %c0_2 = arith.constant 0 : index
    %2 = vector.load %arg2[%c0_1, %c0_2] : memref<42x128xbf16, #tpu.memory_space<vmem>>, vector<42x128xbf16>
    %cst = arith.constant dense<0.000000e+00> : vector<16x128xf32>
    %3 = tpu.matmul %1, %2, %cst {dimension_numbers = #tpu.dot_dimension_numbers<[1], [0], [0], [1], [0, 0, 1, 1], [], []>} : vector<16x42xbf16>, vector<42x128xbf16>, vector<16x128xf32> -> vector<16x128xf32>
    %c0_3 = arith.constant 0 : index
    %c0_4 = arith.constant 0 : index
    %4 = vector.load %arg3[%c0_3, %c0_4] : memref<1x128xf32, #tpu.memory_space<vmem>>, vector<1x128xf32>
    %5 = vector.broadcast %4 : vector<1x128xf32> to vector<16x128xf32>
    %6 = arith.addf %3, %5 : vector<16x128xf32>
    %cst_5 = arith.constant 0.000000e+00 : f32
    %7 = vector.broadcast %cst_5 : f32 to vector<16x128xf32>
    %8 = arith.maximumf %6, %7 : vector<16x128xf32>
    %9 = arith.truncf %8 : vector<16x128xf32> to vector<16x128xbf16>
    %c0_6 = arith.constant 0 : index
    %c0_7 = arith.constant 0 : index
    %10 = vector.load %arg4[%c0_6, %c0_7] : memref<128x128xbf16, #tpu.memory_space<vmem>>, vector<128x128xbf16>
    %cst_8 = arith.constant dense<0.000000e+00> : vector<16x128xf32>
    %11 = tpu.matmul %9, %10, %cst_8 {dimension_numbers = #tpu.dot_dimension_numbers<[1], [0], [0], [1], [0, 0, 1, 1], [], []>} : vector<16x128xbf16>, vector<128x128xbf16>, vector<16x128xf32> -> vector<16x128xf32>
    %cst_9 = arith.constant 0.000000e+00 : f32
    %12 = vector.broadcast %cst_9 : f32 to vector<16x128xf32>
    %13 = arith.maximumf %11, %12 : vector<16x128xf32>
    %14 = arith.truncf %13 : vector<16x128xf32> to vector<16x128xbf16>
    %c0_10 = arith.constant 0 : index
    %c0_11 = arith.constant 0 : index
    %15 = vector.load %arg5[%c0_10, %c0_11] : memref<128x128xbf16, #tpu.memory_space<vmem>>, vector<128x128xbf16>
    %cst_12 = arith.constant dense<0.000000e+00> : vector<16x128xf32>
    %16 = tpu.matmul %14, %15, %cst_12 {dimension_numbers = #tpu.dot_dimension_numbers<[1], [0], [0], [1], [0, 0, 1, 1], [], []>} : vector<16x128xbf16>, vector<128x128xbf16>, vector<16x128xf32> -> vector<16x128xf32>
    %cst_13 = arith.constant dense<0xFF800000> : vector<16xf32>
    %17 = vector.multi_reduction <maximumf>, %16, %cst_13 [1] : vector<16x128xf32> to vector<16xf32>
    %18 = vector.shape_cast %17 : vector<16xf32> to vector<16x1xf32>
    %19 = vector.broadcast %18 : vector<16x1xf32> to vector<16x128xf32>
    %20 = arith.subf %16, %19 : vector<16x128xf32>
    %21 = math.exp %20 : vector<16x128xf32>
    %cst_14 = arith.constant dense<0.000000e+00> : vector<16xf32>
    %22 = vector.multi_reduction <add>, %21, %cst_14 [1] : vector<16x128xf32> to vector<16xf32>
    %23 = vector.shape_cast %22 : vector<16xf32> to vector<16x1xf32>
    %24 = vector.broadcast %23 : vector<16x1xf32> to vector<16x128xf32>
    %25 = arith.divf %21, %24 : vector<16x128xf32>
    %c0_15 = arith.constant 0 : index
    %c0_16 = arith.constant 0 : index
    %26 = vector.load %arg6[%c0_15, %c0_16] : memref<16x128xf32, #tpu.memory_space<vmem>>, vector<16x128xf32>
    tpu.vector_store %arg6[%c0_15, %c0_16], %25 {strides = array<i32>} : memref<16x128xf32, #tpu.memory_space<vmem>>, vector<16x128xf32>,
    return
  }
  func.func @transform_0(%arg0: i32) -> (i32, i32) {
    %c0_i32 = arith.constant 0 : i32
    %c0_i32_0 = arith.constant 0 : i32
    return %arg0, %c0_i32 : i32, i32
  }
  func.func @transform_1(%arg0: i32) -> (i32, i32) {
    %c0_i32 = arith.constant 0 : i32
    %c0_i32_0 = arith.constant 0 : i32
    %c0_i32_1 = arith.constant 0 : i32
    return %c0_i32, %c0_i32_0 : i32, i32
  }
  func.func @transform_2(%arg0: i32) -> (i32, i32) {
    %c0_i32 = arith.constant 0 : i32
    %c0_i32_0 = arith.constant 0 : i32
    %c0_i32_1 = arith.constant 0 : i32
    return %c0_i32, %c0_i32_0 : i32, i32
  }
  func.func @transform_3(%arg0: i32) -> (i32, i32) {
    %c0_i32 = arith.constant 0 : i32
    %c0_i32_0 = arith.constant 0 : i32
    %c0_i32_1 = arith.constant 0 : i32
    return %c0_i32, %c0_i32_0 : i32, i32
  }
  func.func @transform_4(%arg0: i32) -> (i32, i32) {
    %c0_i32 = arith.constant 0 : i32
    %c0_i32_0 = arith.constant 0 : i32
    %c0_i32_1 = arith.constant 0 : i32
    return %c0_i32, %c0_i32_0 : i32, i32
  }
  func.func @transform_5(%arg0: i32) -> (i32, i32) {
    %c0_i32 = arith.constant 0 : i32
    %c0_i32_0 = arith.constant 0 : i32
    return %arg0, %c0_i32 : i32, i32
  }
}

</mosaic_0001>

<llo_original>
// kernel: policy_net_forward.1
$region0: #{policy_net_forward.1}
  #allocation0 [shape = 'u32[]', space=smem, size = 0x4, offset = 0x4, fixed_abs, tag = 'smem constant byte address 0x4 - core index']
  #allocation1 [shape = 'u32[72,128]{1,0:T(1,128)}', space=vmem, size = 0x9000, scoped, tag = 'internal scratch']
  %s0 = inlined_call_operand.vmem [shape: f32[16,42], index: 0, kind: input, shape index: {}]
  %s1 = inlined_call_operand.hbm [shape: bf16[42,128], index: 1, kind: input, shape index: {}]
  %s2 = inlined_call_operand.vmem [shape: f32[1,128], index: 2, kind: input, shape index: {}]
  %s3 = inlined_call_operand.hbm [shape: bf16[128,128], index: 3, kind: input, shape index: {}]
  %s4 = inlined_call_operand.hbm [shape: bf16[128,128], index: 4, kind: input, shape index: {}]
  %s5 = inlined_call_operand.vmem [shape: f32[16,128], index: 5, kind: output, shape index: {}]
  %s6 = sld [smem:[#allocation0]]
  $region42: #{policy_net_forward.1} parent=0
    _
  %s8 = ssub.s32 1, %s6
  %s9 = scalar_select 0, %s8, %s6
  $region1: #{policy_net_forward.1} parent=0
    #allocation2 [shape = 'u8[12288]{0}', space=vmem, size = 0x3000, scoped, tag = 'input window, operand 1, single buffered']
    #allocation3 [shape = 's32[1]{0}', space=sflag, size = 0x4, scoped, tag = 'scoped memory for policy_net_forward.1']
    #allocation4 [shape = 'u8[32768]{0}', space=vmem, size = 0x8000, scoped, tag = 'input window, operand 3, single buffered']
    #allocation5 [shape = 's32[1]{0}', space=sflag, size = 0x4, scoped, tag = 'scoped memory for policy_net_forward.1']
    #allocation6 [shape = 'u8[32768]{0}', space=vmem, size = 0x8000, scoped, tag = 'input window, operand 4, single buffered']
    %10 = vsyncpa [#allocation3], 0
    %11 = vsyncpa [#allocation5], 0
    // Predicated region
    $region2: #{policy_net_forward.1} parent=1 // pred_check
      _
    $region3: #{policy_net_forward.1} parent=1 // pred_check_branch
      %13 = sbr.rel (0) target = $region5
    $region4: #{policy_net_forward.1} parent=1 // pred_region
      _
    $region5: #{policy_net_forward.1} parent=1 // pred_fallthru
      _
    // Predicated region
    $region6: #{policy_net_forward.1} parent=1 // pred_check
      _
    $region7: #{policy_net_forward.1} parent=1 // pred_check_branch
      %15 = sbr.rel (0) target = $region9
    $region8: #{policy_net_forward.1} parent=1 // pred_region
      %17 = vsyncadd [#allocation3], 0
      %s18 = sshll.u32 %s1, 4
      %s19 = int_to_ptr.hbm [resolvable:$true] %s18
      %s20 = sshll.u32 [#allocation2], 4
      %s21 = int_to_ptr.vmem [resolvable:$true] %s20
      %26 = dma.hbm_to_vmem [thread:$0]  %s19, 384, %s21, [#allocation3], 64, 64, 4
    $region9: #{policy_net_forward.1} parent=1 // pred_fallthru
      _
    // Predicated region
    $region10: #{policy_net_forward.1} parent=1 // pred_check
      _
    $region11: #{policy_net_forward.1} parent=1 // pred_check_branch
      %28 = sbr.rel (0) target = $region13
    $region12: #{policy_net_forward.1} parent=1 // pred_region
      _
    $region13: #{policy_net_forward.1} parent=1 // pred_fallthru
      _
    // Predicated region
    $region14: #{policy_net_forward.1} parent=1 // pred_check
      _
    $region15: #{policy_net_forward.1} parent=1 // pred_check_branch
      %30 = sbr.rel (0) target = $region17
    $region16: #{policy_net_forward.1} parent=1 // pred_region
      %32 = vsyncadd [#allocation5], 0
      %s33 = sshll.u32 %s3, 4
      %s34 = int_to_ptr.hbm [resolvable:$true] %s33
      %s35 = sshll.u32 [#allocation4], 4
      %s36 = int_to_ptr.vmem [resolvable:$true] %s35
      %41 = dma.hbm_to_vmem [thread:$0]  %s34, 1024, %s36, [#allocation5], 64, 64, 4
    $region17: #{policy_net_forward.1} parent=1 // pred_fallthru
      _
    // Predicated region
    $region18: #{policy_net_forward.1} parent=1 // pred_check
      _
    $region19: #{policy_net_forward.1} parent=1 // pred_check_branch
      %43 = sbr.rel (0) target = $region21
    $region20: #{policy_net_forward.1} parent=1 // pred_region
      %45 = vsyncadd [#allocation5], 0
      %s46 = sshll.u32 %s4, 4
      %s47 = int_to_ptr.hbm [resolvable:$true] %s46
      %s48 = sshll.u32 [#allocation6], 4
      %s49 = int_to_ptr.vmem [resolvable:$true] %s48
      %54 = dma.hbm_to_vmem [thread:$0]  %s47, 1024, %s49, [#allocation5], 64, 64, 4
    $region21: #{policy_net_forward.1} parent=1 // pred_fallthru
      _
    // Predicated region
    $region22: #{policy_net_forward.1} parent=1 // pred_check
      _
    $region23: #{policy_net_forward.1} parent=1 // pred_check_branch
      %56 = sbr.rel (0) target = $region25
    $region24: #{policy_net_forward.1} parent=1 // pred_region
      %58 = dma.done [#allocation3], 384
    $region25: #{policy_net_forward.1} parent=1 // pred_fallthru
      _
    // Predicated region
    $region26: #{policy_net_forward.1} parent=1 // pred_check
      _
    $region27: #{policy_net_forward.1} parent=1 // pred_check_branch
      %60 = sbr.rel (0) target = $region29
    $region28: #{policy_net_forward.1} parent=1 // pred_region
      %62 = dma.done [#allocation5], 1024
    $region29: #{policy_net_forward.1} parent=1 // pred_fallthru
      _
    // Predicated region
    $region30: #{policy_net_forward.1} parent=1 // pred_check
      _
    $region31: #{policy_net_forward.1} parent=1 // pred_check_branch
      %64 = sbr.rel (0) target = $region33
    $region32: #{policy_net_forward.1} parent=1 // pred_region
      %66 = dma.done [#allocation5], 1024
    $region33: #{policy_net_forward.1} parent=1 // pred_fallthru
      _
    %v68 = vld [vmem:[%s0] sm:$0xff]
    %v69 = vld [vmem:[%s0 + $0x8] sm:$0xff]
    %v70 = vpack.c.bf16 %v69, %v68
    %v71 = vld [vmem:[#allocation2] sm:$0xf]
    %v72 = vld [vmem:[#allocation2 + $0x4] sm:$0xf]
    %v73 = vld [vmem:[#allocation2 + $0x8] sm:$0xf]
    %v74 = vld [vmem:[#allocation2 + $0xc] sm:$0xf]
    %v75 = vld [vmem:[#allocation2 + $0x10] sm:$0xf]
    %v76 = vld [vmem:[#allocation2 + $0x14] sm:$0x1]
    %v77 = vld [vmem:[%s2] sm:$0x1]
    %v79 = vperm.slane %v77, 0
    %v87 = vunpack.c.l.b16 %v71
    %v88 = vunpack.c.l.b16 %v72
    %v89 = vunpack.c.l.b16 %v73
    %v90 = vunpack.c.l.b16 %v74
    %v91 = vunpack.c.l.b16 %v75
    %v92 = vunpack.c.l.b16 %v76
    %v93 = vpack.c.b16 %v88, %v87
    %v94 = vpack.c.b16 %v90, %v89
    %v95 = vpack.c.b16 %v92, %v91
    %vm98 = vcmask 343040
    %v100 = vsel %vm98, %v70, 0
    %vm102 = vcmask 1044480
    %v104 = vsel %vm102, %v95, 0
    %106 = vmatpush.bf16.msra.mxu0 0
    %107 = vmatpush.bf16.msra.mxu0 0
    %108 = vmatpush.bf16.msra.mxu0 0
    %109 = vmatpush.bf16.msra.mxu0 0
    %110 = vmatpush.bf16.msra.mxu0 0
    %111 = vmatpush.bf16.msra.mxu0 %v104
    %112 = vmatpush.bf16.msra.mxu0 %v94
    %113 = vmatpush.bf16.msra.mxu0 %v93
    %114 = vmatmul.bf16.gmra.mxu0 %v100
    %v115 = vpop.f32.mrf.mxu0
    %v116 = vadd.f32 %v79, %v115
    %v117 = vpop.f32.mrf.mxu0
    %v118 = vadd.f32 %v79, %v117
    %119 = vdwg.mxu0
    %v120 = vmax.f32 %v116, 0.0
    %v121 = vmax.f32 %v118, 0.0
    %v122 = vpack.c.bf16 %v121, %v120
    %v123 = vld [vmem:[#allocation4] sm:$0xf]
    %v124 = vld [vmem:[#allocation4 + $0x4] sm:$0xf]
    %v125 = vld [vmem:[#allocation4 + $0x8] sm:$0xf]
    %v126 = vld [vmem:[#allocation4 + $0xc] sm:$0xf]
    %v127 = vld [vmem:[#allocation4 + $0x10] sm:$0xf]
    %v128 = vld [vmem:[#allocation4 + $0x14] sm:$0xf]
    %v129 = vld [vmem:[#allocation4 + $0x18] sm:$0xf]
    %v130 = vld [vmem:[#allocation4 + $0x1c] sm:$0xf]
    %v131 = vld [vmem:[#allocation4 + $0x20] sm:$0xf]
    %v132 = vld [vmem:[#allocation4 + $0x24] sm:$0xf]
    %v133 = vld [vmem:[#allocation4 + $0x28] sm:$0xf]
    %v134 = vld [vmem:[#allocation4 + $0x2c] sm:$0xf]
    %v135 = vld [vmem:[#allocation4 + $0x30] sm:$0xf]
    %v136 = vld [vmem:[#allocation4 + $0x34] sm:$0xf]
    %v137 = vld [vmem:[#allocation4 + $0x38] sm:$0xf]
    %v138 = vld [vmem:[#allocation4 + $0x3c] sm:$0xf]
    %v155 = vunpack.c.l.b16 %v123
    %v156 = vunpack.c.l.b16 %v124
    %v157 = vunpack.c.l.b16 %v125
    %v158 = vunpack.c.l.b16 %v126
    %v159 = vunpack.c.l.b16 %v127
    %v160 = vunpack.c.l.b16 %v128
    %v161 = vunpack.c.l.b16 %v129
    %v162 = vunpack.c.l.b16 %v130
    %v163 = vunpack.c.l.b16 %v131
    %v164 = vunpack.c.l.b16 %v132
    %v165 = vunpack.c.l.b16 %v133
    %v166 = vunpack.c.l.b16 %v134
    %v167 = vunpack.c.l.b16 %v135
    %v168 = vunpack.c.l.b16 %v136
    %v169 = vunpack.c.l.b16 %v137
    %v170 = vunpack.c.l.b16 %v138
    %v171 = vpack.c.b16 %v156, %v155
    %v172 = vpack.c.b16 %v158, %v157
    %v173 = vpack.c.b16 %v160, %v159
    %v174 = vpack.c.b16 %v162, %v161
    %v175 = vpack.c.b16 %v164, %v163
    %v176 = vpack.c.b16 %v166, %v165
    %v177 = vpack.c.b16 %v168, %v167
    %v178 = vpack.c.b16 %v170, %v169
    %187 = vmatpush.bf16.msra.mxu0 %v178
    %188 = vmatpush.bf16.msra.mxu0 %v177
    %189 = vmatpush.bf16.msra.mxu0 %v176
    %190 = vmatpush.bf16.msra.mxu0 %v175
    %191 = vmatpush.bf16.msra.mxu0 %v174
    %192 = vmatpush.bf16.msra.mxu0 %v173
    %193 = vmatpush.bf16.msra.mxu0 %v172
    %194 = vmatpush.bf16.msra.mxu0 %v171
    %195 = vmatmul.bf16.gmra.mxu0 %v122
    %v196 = vpop.f32.mrf.mxu0
    %v197 = vadd.f32 0.0, %v196
    %v198 = vpop.f32.mrf.mxu0
    %v199 = vadd.f32 0.0, %v198
    %200 = vdwg.mxu0
    %v201 = vmax.f32 %v197, 0.0
    %v202 = vmax.f32 %v199, 0.0
    %v203 = vpack.c.bf16 %v202, %v201
    %v204 = vld [vmem:[#allocation6] sm:$0xf]
    %v205 = vld [vmem:[#allocation6 + $0x4] sm:$0xf]
    %v206 = vld [vmem:[#allocation6 + $0x8] sm:$0xf]
    %v207 = vld [vmem:[#allocation6 + $0xc] sm:$0xf]
    %v208 = vld [vmem:[#allocation6 + $0x10] sm:$0xf]
    %v209 = vld [vmem:[#allocation6 + $0x14] sm:$0xf]
    %v210 = vld [vmem:[#allocation6 + $0x18] sm:$0xf]
    %v211 = vld [vmem:[#allocation6 + $0x1c] sm:$0xf]
    %v212 = vld [vmem:[#allocation6 + $0x20] sm:$0xf]
    %v213 = vld [vmem:[#allocation6 + $0x24] sm:$0xf]
    %v214 = vld [vmem:[#allocation6 + $0x28] sm:$0xf]
    %v215 = vld [vmem:[#allocation6 + $0x2c] sm:$0xf]
    %v216 = vld [vmem:[#allocation6 + $0x30] sm:$0xf]
    %v217 = vld [vmem:[#allocation6 + $0x34] sm:$0xf]
    %v218 = vld [vmem:[#allocation6 + $0x38] sm:$0xf]
    %v219 = vld [vmem:[#allocation6 + $0x3c] sm:$0xf]
    %v236 = vunpack.c.l.b16 %v204
    %v237 = vunpack.c.l.b16 %v205
    %v238 = vunpack.c.l.b16 %v206
    %v239 = vunpack.c.l.b16 %v207
    %v240 = vunpack.c.l.b16 %v208
    %v241 = vunpack.c.l.b16 %v209
    %v242 = vunpack.c.l.b16 %v210
    %v243 = vunpack.c.l.b16 %v211
    %v244 = vunpack.c.l.b16 %v212
    %v245 = vunpack.c.l.b16 %v213
    %v246 = vunpack.c.l.b16 %v214
    %v247 = vunpack.c.l.b16 %v215
    %v248 = vunpack.c.l.b16 %v216
    %v249 = vunpack.c.l.b16 %v217
    %v250 = vunpack.c.l.b16 %v218
    %v251 = vunpack.c.l.b16 %v219
    %v252 = vpack.c.b16 %v237, %v236
    %v253 = vpack.c.b16 %v239, %v238
    %v254 = vpack.c.b16 %v241, %v240
    %v255 = vpack.c.b16 %v243, %v242
    %v256 = vpack.c.b16 %v245, %v244
    %v257 = vpack.c.b16 %v247, %v246
    %v258 = vpack.c.b16 %v249, %v248
    %v259 = vpack.c.b16 %v251, %v250
    %268 = vmatpush.bf16.msra.mxu0 %v259
    %269 = vmatpush.bf16.msra.mxu0 %v258
    %270 = vmatpush.bf16.msra.mxu0 %v257
    %271 = vmatpush.bf16.msra.mxu0 %v256
    %272 = vmatpush.bf16.msra.mxu0 %v255
    %273 = vmatpush.bf16.msra.mxu0 %v254
    %274 = vmatpush.bf16.msra.mxu0 %v253
    %275 = vmatpush.bf16.msra.mxu0 %v252
    %276 = vmatmul.bf16.gmra.mxu0 %v203
    %v277 = vpop.f32.mrf.mxu0
    %v278 = vadd.f32 0.0, %v277
    %v279 = vpop.f32.mrf.mxu0
    %v280 = vadd.f32 0.0, %v279
    %281 = vdwg.mxu0
    %282 = vmax.xlane.f32.xlu0 %v278
    %v283 = vpop.xlane.xlu0 %282
    %284 = vmax.xlane.f32.xlu0 %v280
    %v285 = vpop.xlane.xlu0 %284
    %v286 = vsub.f32 %v278, %v283
    %v287 = vsub.f32 %v280, %v285
    %v288 = vmul.f32 %v286, 1.442695
    %v289 = vpow.pop %v288
    %v290 = vmul.f32 %v287, 1.442695
    %v291 = vpow.pop %v290
    %292 = vadd.xlane.f32.xlu0 %v289
    %v293 = vpop.xlane.xlu0 %292
    %294 = vadd.xlane.f32.xlu0 %v291
    %v295 = vpop.xlane.xlu0 %294
    %v296 = vrcp.pop %v293
    %v297 = vmul.f32 %v293, %v296
    %v298 = vsub.f32 1.0, %v297
    %v299 = vmul.f32 %v296, %v298
    %v300 = vadd.f32 %v296, %v299
    %vm301 = vweird.f32 %v293
    %vm302 = vweird.f32 %v296
    %vm303 = vmor %vm301, %vm302
    %v304 = vsel %vm303, %v296, %v300
    %v305 = vand.u32 2147483647, %v293
    %vm306 = vcmp.eq.f32.partialorder %v305, 8.507059e+37
    %v307 = vand.u32 %v293, 2147483648
    %v308 = vor.u32 1.1754944e-38, %v307
    %v309 = vsel %vm306, %v308, %v304
    %v310 = vmul.f32 %v289, %v309
    %v311 = vrcp.pop %v295
    %v312 = vmul.f32 %v295, %v311
    %v313 = vsub.f32 1.0, %v312
    %v314 = vmul.f32 %v311, %v313
    %v315 = vadd.f32 %v311, %v314
    %vm316 = vweird.f32 %v295
    %vm317 = vweird.f32 %v311
    %vm318 = vmor %vm316, %vm317
    %v319 = vsel %vm318, %v311, %v315
    %v320 = vand.u32 2147483647, %v295
    %vm321 = vcmp.eq.f32.partialorder %v320, 8.507059e+37
    %v322 = vand.u32 %v295, 2147483648
    %v323 = vor.u32 1.1754944e-38, %v322
    %v324 = vsel %vm321, %v323, %v319
    %v325 = vmul.f32 %v291, %v324
    %326 = vst [vmem:[%s5] sm:$0xff] %v310
    %327 = vst [vmem:[%s5 + $0x8] sm:$0xff] %v325
    // Predicated region
    $region34: #{policy_net_forward.1} parent=1 // pred_check
      _
    $region35: #{policy_net_forward.1} parent=1 // pred_check_branch
      %329 = sbr.rel (0) target = $region37
    $region36: #{policy_net_forward.1} parent=1 // pred_region
      _
    $region37: #{policy_net_forward.1} parent=1 // pred_fallthru
      _
    // Predicated region
    $region38: #{policy_net_forward.1} parent=1 // pred_check
      _
    $region39: #{policy_net_forward.1} parent=1 // pred_check_branch
      %331 = sbr.rel (0) target = $region41
    $region40: #{policy_net_forward.1} parent=1 // pred_region
      _
    $region41: #{policy_net_forward.1} parent=1 // pred_fallthru
      _
    %332 = vsyncpa [#allocation3], 1
    %333 = vsyncpa [#allocation5], 1

</llo_original>
